<compile_context>
chip_gen: v7x
topology: tpu7x:2x2x1
jax: 0.10.0
libtpu: 0.0.40
codegen_flags: <defaults>
</compile_context>

<pallas_src>
import functools
import math

import jax
import jax.numpy as jnp
from jax.experimental import pallas as pl
from jax.experimental.pallas import tpu as pltpu

_EPS = 1e-8  # torch.nn.CosineSimilarity default

_PAIRWISE_VMEM_BUDGET = 40 * (1 << 20)
_PAIRWISE_VMEM_LIMIT = 48 * (1 << 20)
_ROWWISE_VMEM_BUDGET = 12 * (1 << 20)
_ROWWISE_VMEM_LIMIT = 32 * (1 << 20)


# ----------------------------------------------------------------------------
# helpers
# ----------------------------------------------------------------------------
def _round_up(n, m):
    return ((n + m - 1) // m) * m


def _pad_rows(a, rows):
    """Zero-pad axis 0 of `a` up to `rows` rows."""
    if a.shape[0] == rows:
        return a
    pad = [(0, rows - a.shape[0])] + [(0, 0)] * (a.ndim - 1)
    return jnp.pad(a, pad)


def _pad2(a, rows, cols):
    """Zero-pad a 2-D array up to (rows, cols)."""
    pr, pc = rows - a.shape[0], cols - a.shape[1]
    if pr == 0 and pc == 0:
        return a
    return jnp.pad(a, ((0, pr), (0, pc)))


def _pairwise_tiles(bx, by, h, itm):
    """Pick (TM, TN, TK) + padded extents against a VMEM budget."""
    lane = 128
    sub = {1: 32, 2: 16}.get(itm, 8)  # dtype sublane packing

    by_al = _round_up(by, lane)
    tn = min(256, by_al)              # lane-dense output; 256 matches v6e/v7x MXU

    h_al = _round_up(h, lane)
    tk = min(2048, h_al)              # K tile keeps VMEM bounded for any H
    hp = _round_up(h_al, tk)

    bx_al = _round_up(bx, sub)

    # VMEM accounting (bytes): double-buffered x & yT input blocks,
    # double-buffered f32 output, f32 accumulator scratch, norm blocks.
    fixed = 2 * tk * tn * itm + 2 * tn * 4            # yT dbl-buf + ny
    per_row = 2 * tk * itm + 3 * tn * 4 + 2 * 4       # x dbl-buf + out dbl-buf + acc + nx
    tm = (_PAIRWISE_VMEM_BUDGET - fixed) // per_row
    tm = int(max(sub, min(1024, bx_al, (tm // sub) * sub)))

    # Balance the row tiling so padding waste stays small.
    gm = -(-bx_al // tm)
    tm = _round_up(-(-bx_al // gm), sub)
    bpx = gm * tm
    bpy = _round_up(by_al, tn)

    # v7x megacore: make sure at least one "parallel" axis has >= 2 steps
    # when there is enough lane width to split (neutral on v5e/v6e).
    if gm == 1 and bpy == tn and tn >= 2 * lane:
        tn //= 2

    return tm, tn, tk, bpx, bpy, hp


# ----------------------------------------------------------------------------
# kernels
# ----------------------------------------------------------------------------
def _pairwise_cos_kernel(x_ref, yt_ref, nx_ref, ny_ref, o_ref, acc_ref, *,
                         inv_temp):
    """Pairwise cosine block with K-tiled hidden dim.

    x_ref:  (TM, TK)  rows of x, K-chunk k
    yt_ref: (TK, TN)  pre-transposed y (H-major), K-chunk k
    nx_ref: (TM, 1)   precomputed ||x_i||_2 (f32)
    ny_ref: (1, TN)   precomputed ||y_j||_2 (f32), lane-aligned row
    o_ref:  (TM, TN)  cos(x_i, y_j) / temp   (lane-dense output)
    acc_ref:(TM, TN)  f32 accumulator scratch (resident across k)
    """
    k = pl.program_id(2)

    @pl.when(k == 0)
    def _():
        acc_ref[...] = jnp.zeros_like(acc_ref)

    # Canonical (TM,K)x(K,TN) MXU matmul — no in-kernel transpose.
    acc_ref[...] += jnp.dot(x_ref[...], yt_ref[...],
                            preferred_element_type=jnp.float32)

    @pl.when(k == pl.num_programs(2) - 1)
    def _():
        denom = jnp.maximum(nx_ref[...] * ny_ref[...], _EPS)   # (TM, TN)
        o_ref[...] = ((acc_ref[...] * inv_temp) / denom).astype(o_ref.dtype)


def _rowwise_cos_kernel(x_ref, y_ref, o_ref, *, inv_temp):
    """Per-row cosine similarity / temp.

    x_ref / y_ref: (TR, H) or (1, H) (fully-broadcast operand) VMEM tiles.
    o_ref: (TR, 1).
    """
    x = x_ref[...].astype(jnp.float32)
    y = y_ref[...].astype(jnp.float32)
    dot = jnp.sum(x * y, axis=-1, keepdims=True)
    nx = jnp.sqrt(jnp.sum(x * x, axis=-1, keepdims=True))
    ny = jnp.sqrt(jnp.sum(y * y, axis=-1, keepdims=True))
    denom = jnp.maximum(nx * ny, _EPS)
    o_ref[...] = ((dot * inv_temp) / denom).astype(o_ref.dtype)


# ----------------------------------------------------------------------------
# wrappers
# ----------------------------------------------------------------------------
def _pairwise(x2, y2, inv_temp):
    """x2: (Bx, H), y2: (By, H) -> (Bx, By) cosine / temp via K-tiled MXU."""
    bx, h = x2.shape
    by = y2.shape[0]
    itm = max(x2.dtype.itemsize, y2.dtype.itemsize)

    tm, tn, tk, bpx, bpy, hp = _pairwise_tiles(bx, by, h, itm)

    xp = _pad2(x2, bpx, hp)
    yp = _pad2(y2, bpy, hp)

    # Exact f32 L2 norms, precomputed once (zero-padding does not change them).
    nx = jnp.sqrt(jnp.sum(jnp.square(xp.astype(jnp.float32)),
                          axis=-1, keepdims=True))                  # (bpx, 1)
    ny = jnp.sqrt(jnp.sum(jnp.square(yp.astype(jnp.float32)),
                          axis=-1))[None, :]                        # (1, bpy)

    ytp = yp.T                                                      # (hp, bpy)

    grid = (bpx // tm, bpy // tn, hp // tk)
    out = pl.pallas_call(
        functools.partial(_pairwise_cos_kernel, inv_temp=inv_temp),
        out_shape=jax.ShapeDtypeStruct((bpx, bpy), jnp.float32),
        grid=grid,
        in_specs=[
            pl.BlockSpec((tm, tk), lambda i, j, k: (i, k)),
            pl.BlockSpec((tk, tn), lambda i, j, k: (k, j)),
            pl.BlockSpec((tm, 1), lambda i, j, k: (i, 0)),
            pl.BlockSpec((1, tn), lambda i, j, k: (0, j)),
        ],
        out_specs=pl.BlockSpec((tm, tn), lambda i, j, k: (i, j)),
        scratch_shapes=[pltpu.VMEM((tm, tn), jnp.float32)],
        compiler_params=pltpu.CompilerParams(
            dimension_semantics=("parallel", "parallel", "arbitrary"),
            vmem_limit_bytes=_PAIRWISE_VMEM_LIMIT),
    )(xp, ytp, nx, ny)
    return out[:bx, :by]


def _rowwise(xb, yb, inv_temp, lead_shape, h, n):
    """Rows (N, H) / (1, H) -> broadcast-shaped cosine / temp, row-tiled."""
    # Per-row VMEM cost: double-buffered input tiles + in-kernel f32 casts.
    per_row = h * (2 * xb.dtype.itemsize + 2 * yb.dtype.itemsize + 8)
    tr = max(8, min(2048, (_ROWWISE_VMEM_BUDGET // per_row) // 8 * 8))

    n8 = _round_up(n, 8)
    if n8 <= tr:
        tr, n_pad = n8, n8
    else:
        n_pad = _round_up(n8, tr)

    specs, ops = [], []
    for a in (xb, yb):
        if a.shape[0] == 1 and n > 1:
            # Fully-broadcast operand: single (1, H) block, constant index_map
            # (no HBM materialization of the broadcast).
            specs.append(pl.BlockSpec((1, h), lambda i: (0, 0)))
            ops.append(a)
        else:
            specs.append(pl.BlockSpec((tr, h), lambda i: (i, 0)))
            ops.append(_pad_rows(a, n_pad))

    out = pl.pallas_call(
        functools.partial(_rowwise_cos_kernel, inv_temp=inv_temp),
        out_shape=jax.ShapeDtypeStruct((n_pad, 1), jnp.float32),
        grid=(n_pad // tr,),
        in_specs=specs,
        # TODO(synk): output block is (TR, 1) (masked stores); output traffic
        # is negligible here so a lane-dense relayout is not worth it.
        out_specs=pl.BlockSpec((tr, 1), lambda i: (i, 0)),
        compiler_params=pltpu.CompilerParams(
            dimension_semantics=("parallel",),
            vmem_limit_bytes=_ROWWISE_VMEM_LIMIT),
    )(*ops)
    return out[:n, 0].reshape(lead_shape)


def similarity(x, y, temp):
    """JAX wrapper reproducing Similarity.forward(x, y) (= cos(x,y)/temp)."""
    x = jnp.asarray(x)
    y = jnp.asarray(y)
    assert x.shape[-1] == y.shape[-1], "hidden dims must match"
    h = x.shape[-1]
    inv_temp = 1.0 / float(temp)

    # SimCSE pairwise fast path: no broadcast materialization, MXU dots.
    if x.ndim == 3 and y.ndim == 3:
        if x.shape[1] == 1 and y.shape[0] == 1:
            return _pairwise(x.reshape(x.shape[0], h),
                             y.reshape(y.shape[1], h), inv_temp)
        if x.shape[0] == 1 and y.shape[1] == 1:
            # out[i, j] = cos(y[i, 0], x[0, j]) / temp
            return _pairwise(y.reshape(y.shape[0], h),
                             x.reshape(x.shape[1], h), inv_temp)

    # General broadcast path.
    lead_shape = jnp.broadcast_shapes(x.shape[:-1], y.shape[:-1])
    n = math.prod(lead_shape) if lead_shape else 1

    def _flatten(a):
        rows = math.prod(a.shape[:-1]) if a.ndim > 1 else 1
        if rows == n or rows == 1:
            return a.reshape(rows, h)
        # TODO(synk): partial broadcasts still materialize the operand in HBM;
        # an index_map-based replication would avoid the extra traffic.
        return jnp.broadcast_to(a, lead_shape + (h,)).reshape(n, h)

    xb = _flatten(x)
    yb = _flatten(y)
    return _rowwise(xb, yb, inv_temp, lead_shape, h, n)


# ----------------------------------------------------------------------------
# demo / self-check
# ----------------------------------------------------------------------------
if __name__ == "__main__":
    key = jax.random.PRNGKey(0)
    kx, ky = jax.random.split(key)

    B, H = 8, 32
    temp = 0.05

    # SimCSE call pattern: x (B, 1, H) vs y (1, B, H) -> (B, B) scores.
    x = jax.random.normal(kx, (B, 1, H), dtype=jnp.float32)
    y = jax.random.normal(ky, (1, B, H), dtype=jnp.float32)

    out = jax.block_until_ready(similarity(x, y, temp))

    dot = jnp.sum(x * y, axis=-1)
    nx = jnp.linalg.norm(x, axis=-1)
    ny = jnp.linalg.norm(y, axis=-1)
    ref = dot / jnp.maximum(nx * ny, _EPS) / temp
    assert out.shape == ref.shape == (B, B)
    assert jnp.max(jnp.abs(out - ref)) < 1e-3, float(jnp.max(jnp.abs(out - ref)))

    # General (same-shape) path.
    x2 = jax.random.normal(kx, (2, B, H), dtype=jnp.float32)
    y2 = jax.random.normal(ky, (2, B, H), dtype=jnp.float32)
    out2 = jax.block_until_ready(similarity(x2, y2, temp))
    ref2 = (jnp.sum(x2 * y2, axis=-1)
            / jnp.maximum(jnp.linalg.norm(x2, axis=-1)
                          * jnp.linalg.norm(y2, axis=-1), _EPS) / temp)
    assert out2.shape == ref2.shape == (2, B)
    assert jnp.max(jnp.abs(out2 - ref2)) < 1e-3, float(jnp.max(jnp.abs(out2 - ref2)))

    # Fully-broadcast operand path (no HBM materialization of the broadcast).
    y3 = jax.random.normal(ky, (1, 1, H), dtype=jnp.float32)
    out3 = jax.block_until_ready(similarity(x2, y3, temp))
    ref3 = (jnp.sum(x2 * y3, axis=-1)
            / jnp.maximum(jnp.linalg.norm(x2, axis=-1)
                          * jnp.linalg.norm(y3, axis=-1), _EPS) / temp)
    assert out3.shape == ref3.shape == (2, B)
    assert jnp.max(jnp.abs(out3 - ref3)) < 1e-3, float(jnp.max(jnp.abs(out3 - ref3)))

    print("KERNEL_OK")
</pallas_src>

<mosaic_0001>
module attributes {stable_mosaic.version = 11 : i64} {
  func.func @_pairwise_cos_kernel(%arg0: i32, %arg1: i32, %arg2: i32, %arg3: memref<8x128xf32, #tpu.memory_space<vmem>>, %arg4: memref<128x128xf32, #tpu.memory_space<vmem>>, %arg5: memref<8x1xf32, #tpu.memory_space<vmem>>, %arg6: memref<1x128xf32, #tpu.memory_space<vmem>>, %arg7: memref<8x128xf32, #tpu.memory_space<vmem>>, %arg8: memref<8x128xf32, #tpu.memory_space<vmem>>) attributes {dimension_semantics = [#tpu.dimension_semantics<parallel>, #tpu.dimension_semantics<parallel>, #tpu.dimension_semantics<arbitrary>], iteration_bounds = array<i64: 1, 1, 1>, scalar_prefetch = 0 : i64, scratch_operands = 1 : i64, tpu.core_type = #tpu.core_type<tc>, window_params = [{transform_indices = @transform_0, window_bounds = array<i64: 8, 128>}, {transform_indices = @transform_1, window_bounds = array<i64: 128, 128>}, {transform_indices = @transform_2, window_bounds = array<i64: 8, 1>}, {transform_indices = @transform_3, window_bounds = array<i64: 1, 128>}, {transform_indices = @transform_4, window_bounds = array<i64: 8, 128>}]} {
    %c0_i32 = arith.constant 0 : i32
    %0 = arith.cmpi eq, %arg2, %c0_i32 : i32
    %1 = arith.extui %0 : i1 to i32
    %c0_i32_0 = arith.constant 0 : i32
    %2 = arith.cmpi ne, %1, %c0_i32_0 : i32
    scf.if %2 {
      %cst_10 = arith.constant 0.000000e+00 : f32
      %12 = vector.broadcast %cst_10 : f32 to vector<8x128xf32>
      %c0_11 = arith.constant 0 : index
      %c0_12 = arith.constant 0 : index
      %13 = vector.load %arg8[%c0_11, %c0_12] : memref<8x128xf32, #tpu.memory_space<vmem>>, vector<8x128xf32>
      tpu.vector_store %arg8[%c0_11, %c0_12], %12 {strides = array<i32>} : memref<8x128xf32, #tpu.memory_space<vmem>>, vector<8x128xf32>,
    } else {
    }
    %c0 = arith.constant 0 : index
    %c0_1 = arith.constant 0 : index
    %3 = vector.load %arg8[%c0, %c0_1] : memref<8x128xf32, #tpu.memory_space<vmem>>, vector<8x128xf32>
    %c0_2 = arith.constant 0 : index
    %c0_3 = arith.constant 0 : index
    %4 = vector.load %arg3[%c0_2, %c0_3] : memref<8x128xf32, #tpu.memory_space<vmem>>, vector<8x128xf32>
    %c0_4 = arith.constant 0 : index
    %c0_5 = arith.constant 0 : index
    %5 = vector.load %arg4[%c0_4, %c0_5] : memref<128x128xf32, #tpu.memory_space<vmem>>, vector<128x128xf32>
    %cst = arith.constant dense<0.000000e+00> : vector<8x128xf32>
    %6 = tpu.matmul %4, %5, %cst {dimension_numbers = #tpu.dot_dimension_numbers<[1], [0], [0], [1], [0, 0, 1, 1], [], []>} : vector<8x128xf32>, vector<128x128xf32>, vector<8x128xf32> -> vector<8x128xf32>
    %7 = arith.addf %3, %6 : vector<8x128xf32>
    %c0_6 = arith.constant 0 : index
    %c0_7 = arith.constant 0 : index
    %8 = vector.load %arg8[%c0_6, %c0_7] : memref<8x128xf32, #tpu.memory_space<vmem>>, vector<8x128xf32>
    tpu.vector_store %arg8[%c0_6, %c0_7], %7 {strides = array<i32>} : memref<8x128xf32, #tpu.memory_space<vmem>>, vector<8x128xf32>,
    %c0_i32_8 = arith.constant 0 : i32
    %9 = arith.cmpi eq, %arg2, %c0_i32_8 : i32
    %10 = arith.extui %9 : i1 to i32
    %c0_i32_9 = arith.constant 0 : i32
    %11 = arith.cmpi ne, %10, %c0_i32_9 : i32
    scf.if %11 {
      %c0_10 = arith.constant 0 : index
      %c0_11 = arith.constant 0 : index
      %12 = vector.load %arg5[%c0_10, %c0_11] : memref<8x1xf32, #tpu.memory_space<vmem>>, vector<8x1xf32>
      %c0_12 = arith.constant 0 : index
      %c0_13 = arith.constant 0 : index
      %13 = vector.load %arg6[%c0_12, %c0_13] : memref<1x128xf32, #tpu.memory_space<vmem>>, vector<1x128xf32>
      %14 = vector.broadcast %12 : vector<8x1xf32> to vector<8x128xf32>
      %15 = vector.broadcast %13 : vector<1x128xf32> to vector<8x128xf32>
      %16 = arith.mulf %14, %15 : vector<8x128xf32>
      %cst_14 = arith.constant 9.99999993E-9 : f32
      %17 = vector.broadcast %cst_14 : f32 to vector<8x128xf32>
      %18 = arith.maximumf %16, %17 : vector<8x128xf32>
      %c0_15 = arith.constant 0 : index
      %c0_16 = arith.constant 0 : index
      %19 = vector.load %arg8[%c0_15, %c0_16] : memref<8x128xf32, #tpu.memory_space<vmem>>, vector<8x128xf32>
      %cst_17 = arith.constant 2.000000e+01 : f32
      %20 = vector.broadcast %cst_17 : f32 to vector<8x128xf32>
      %21 = arith.mulf %19, %20 : vector<8x128xf32>
      %22 = arith.divf %21, %18 : vector<8x128xf32>
      %c0_18 = arith.constant 0 : index
      %c0_19 = arith.constant 0 : index
      %23 = vector.load %arg7[%c0_18, %c0_19] : memref<8x128xf32, #tpu.memory_space<vmem>>, vector<8x128xf32>
      tpu.vector_store %arg7[%c0_18, %c0_19], %22 {strides = array<i32>} : memref<8x128xf32, #tpu.memory_space<vmem>>, vector<8x128xf32>,
    } else {
    }
    return
  }
  func.func @transform_0(%arg0: i32, %arg1: i32, %arg2: i32) -> (i32, i32) {
    %c0_i32 = arith.constant 0 : i32
    return %arg0, %arg2 : i32, i32
  }
  func.func @transform_1(%arg0: i32, %arg1: i32, %arg2: i32) -> (i32, i32) {
    %c0_i32 = arith.constant 0 : i32
    return %arg2, %arg1 : i32, i32
  }
  func.func @transform_2(%arg0: i32, %arg1: i32, %arg2: i32) -> (i32, i32) {
    %c0_i32 = arith.constant 0 : i32
    %c0_i32_0 = arith.constant 0 : i32
    return %arg0, %c0_i32 : i32, i32
  }
  func.func @transform_3(%arg0: i32, %arg1: i32, %arg2: i32) -> (i32, i32) {
    %c0_i32 = arith.constant 0 : i32
    %c0_i32_0 = arith.constant 0 : i32
    return %c0_i32, %arg1 : i32, i32
  }
  func.func @transform_4(%arg0: i32, %arg1: i32, %arg2: i32) -> (i32, i32) {
    %c0_i32 = arith.constant 0 : i32
    return %arg0, %arg1 : i32, i32
  }
}

</mosaic_0001>

<llo_original>
// kernel: tpu_custom_call.1
$region0: #{tpu_custom_call.1}
  #allocation0 [shape = 'u32[]', space=smem, size = 0x4, offset = 0x4, fixed_abs, tag = 'smem constant byte address 0x4 - core index']
  #allocation1 [shape = 'u32[144,128]{1,0:T(1,128)}', space=vmem, size = 0x12000, scoped, tag = 'internal scratch']
  #allocation2 [shape = 'f32[8,128]{1,0:T(8,128)}', space=vmem, size = 0x1000, scoped, tag = 'scratch operand']
  %s0 = inlined_call_operand.vmem [shape: f32[8,128], index: 0, kind: input, shape index: {}]
  %s1 = inlined_call_operand.hbm [shape: f32[128,128], index: 1, kind: input, shape index: {}]
  %s2 = inlined_call_operand.vmem [shape: f32[8,1], index: 2, kind: input, shape index: {}]
  %s3 = inlined_call_operand.vmem [shape: f32[1,128], index: 3, kind: input, shape index: {}]
  %s4 = inlined_call_operand.hbm [shape: f32[8,128], index: 4, kind: output, shape index: {}]
  %s5 = sld [smem:[#allocation0]]
  $region38: #{tpu_custom_call.1} parent=0
    _
  %s7 = ssub.s32 1, %s5
  %s8 = scalar_select 0, %s7, %s5
  $region1: #{tpu_custom_call.1} parent=0
    #allocation3 [shape = 'u8[65536]{0}', space=vmem, size = 0x10000, scoped, tag = 'input window, operand 1, single buffered']
    #allocation4 [shape = 's32[1]{0}', space=sflag, size = 0x4, scoped, tag = 'scoped memory for tpu_custom_call.1']
    #allocation5 [shape = 's32[1]{0}', space=sflag, size = 0x4, scoped, tag = 'scoped memory for tpu_custom_call.1']
    #allocation6 [shape = 'u8[4096]{0}', space=vmem, size = 0x1000, scoped, tag = 'output window, operand 0, single buffered']
    %9 = vsyncpa [#allocation4], 0
    %10 = vsyncpa [#allocation5], 0
    // Predicated region
    $region2: #{tpu_custom_call.1} parent=1 // pred_check
      _
    $region3: #{tpu_custom_call.1} parent=1 // pred_check_branch
      %12 = sbr.rel (0) target = $region5
    $region4: #{tpu_custom_call.1} parent=1 // pred_region
      _
    $region5: #{tpu_custom_call.1} parent=1 // pred_fallthru
      _
    // Predicated region
    $region6: #{tpu_custom_call.1} parent=1 // pred_check
      _
    $region7: #{tpu_custom_call.1} parent=1 // pred_check_branch
      %14 = sbr.rel (0) target = $region9
    $region8: #{tpu_custom_call.1} parent=1 // pred_region
      %s16 = ssub.s32 2048, 2048
      %17 = vsyncadd [#allocation4], %s16
      %s18 = sshll.u32 [#allocation3], 4
      %s19 = int_to_ptr.vmem [resolvable:$true] %s18
      %24 = dma.hbm_to_vmem [thread:$0]  %s1, 2048, %s19, [#allocation4], 128, 128, 8
    $region9: #{tpu_custom_call.1} parent=1 // pred_fallthru
      _
    // Predicated region
    $region10: #{tpu_custom_call.1} parent=1 // pred_check
      _
    $region11: #{tpu_custom_call.1} parent=1 // pred_check_branch
      %26 = sbr.rel (0) target = $region13
    $region12: #{tpu_custom_call.1} parent=1 // pred_region
      _
    $region13: #{tpu_custom_call.1} parent=1 // pred_fallthru
      _
    // Predicated region
    $region14: #{tpu_custom_call.1} parent=1 // pred_check
      _
    $region15: #{tpu_custom_call.1} parent=1 // pred_check_branch
      %28 = sbr.rel (0) target = $region17
    $region16: #{tpu_custom_call.1} parent=1 // pred_region
      _
    $region17: #{tpu_custom_call.1} parent=1 // pred_fallthru
      _
    // Predicated region
    $region18: #{tpu_custom_call.1} parent=1 // pred_check
      _
    $region19: #{tpu_custom_call.1} parent=1 // pred_check_branch
      %30 = sbr.rel (0) target = $region21
    $region20: #{tpu_custom_call.1} parent=1 // pred_region
      %31 = dma.done [#allocation4], 2048
    $region21: #{tpu_custom_call.1} parent=1 // pred_fallthru
      _
    %p32 = scmp.eq.s32.totalorder 0, 0
    // Predicated region
    $region22: #{tpu_custom_call.1} parent=1 // pred_check
      %p33 = pneg %p32
    $region23: #{tpu_custom_call.1} parent=1 // pred_check_branch
      %35 = sbr.rel (%p33) target = $region25
    $region24: #{tpu_custom_call.1} parent=1 // pred_region
      %36 = vst [vmem:[#allocation2] sm:$0xff] 0.0
    $region25: #{tpu_custom_call.1} parent=1 // pred_fallthru
      _
    %v37 = vld [vmem:[#allocation2] sm:$0xff]
    %v38 = vld [vmem:[%s0] sm:$0xff]
    %v39 = vld [vmem:[#allocation3] sm:$0xff]
    %v40 = vld [vmem:[#allocation3 + $0x8] sm:$0xff]
    %v41 = vld [vmem:[#allocation3 + $0x10] sm:$0xff]
    %v42 = vld [vmem:[#allocation3 + $0x18] sm:$0xff]
    %v43 = vld [vmem:[#allocation3 + $0x20] sm:$0xff]
    %v44 = vld [vmem:[#allocation3 + $0x28] sm:$0xff]
    %v45 = vld [vmem:[#allocation3 + $0x30] sm:$0xff]
    %v46 = vld [vmem:[#allocation3 + $0x38] sm:$0xff]
    %v47 = vld [vmem:[#allocation3 + $0x40] sm:$0xff]
    %v48 = vld [vmem:[#allocation3 + $0x48] sm:$0xff]
    %v49 = vld [vmem:[#allocation3 + $0x50] sm:$0xff]
    %v50 = vld [vmem:[#allocation3 + $0x58] sm:$0xff]
    %v51 = vld [vmem:[#allocation3 + $0x60] sm:$0xff]
    %v52 = vld [vmem:[#allocation3 + $0x68] sm:$0xff]
    %v53 = vld [vmem:[#allocation3 + $0x70] sm:$0xff]
    %v54 = vld [vmem:[#allocation3 + $0x78] sm:$0xff]
    %55 = vmatprep.subr.mxu0 0.0
    %56 = vmatpush1.msra.mxu0 %v39
    %57 = vmatprep.subr.mxu0 0.0
    %58 = vmatpush1.msra.mxu0 %v40
    %59 = vmatprep.subr.mxu0 0.0
    %60 = vmatpush1.msra.mxu0 %v41
    %61 = vmatprep.subr.mxu0 0.0
    %62 = vmatpush1.msra.mxu0 %v42
    %63 = vmatprep.subr.mxu0 0.0
    %64 = vmatpush1.msra.mxu0 %v43
    %65 = vmatprep.subr.mxu0 0.0
    %66 = vmatpush1.msra.mxu0 %v44
    %67 = vmatprep.subr.mxu0 0.0
    %68 = vmatpush1.msra.mxu0 %v45
    %69 = vmatprep.subr.mxu0 0.0
    %70 = vmatpush1.msra.mxu0 %v46
    %71 = vmatprep.subr.mxu0 0.0
    %72 = vmatpush1.msra.mxu0 %v47
    %73 = vmatprep.subr.mxu0 0.0
    %74 = vmatpush1.msra.mxu0 %v48
    %75 = vmatprep.subr.mxu0 0.0
    %76 = vmatpush1.msra.mxu0 %v49
    %77 = vmatprep.subr.mxu0 0.0
    %78 = vmatpush1.msra.mxu0 %v50
    %79 = vmatprep.subr.mxu0 0.0
    %80 = vmatpush1.msra.mxu0 %v51
    %81 = vmatprep.subr.mxu0 0.0
    %82 = vmatpush1.msra.mxu0 %v52
    %83 = vmatprep.subr.mxu0 0.0
    %84 = vmatpush1.msra.mxu0 %v53
    %85 = vmatprep.subr.mxu0 0.0
    %86 = vmatpush1.msra.mxu0 %v54
    %87 = vmatprep.subr.mxu0 0.0
    %88 = vmatpush1.msra.mxu0 0.0
    %89 = vmatprep.subr.mxu0 0.0
    %90 = vmatpush1.msra.mxu0 0.0
    %91 = vmatprep.subr.mxu0 0.0
    %92 = vmatpush1.msra.mxu0 0.0
    %93 = vmatprep.subr.mxu0 0.0
    %94 = vmatpush1.msra.mxu0 0.0
    %95 = vmatprep.subr.mxu0 0.0
    %96 = vmatpush1.msra.mxu0 0.0
    %97 = vmatprep.subr.mxu0 0.0
    %98 = vmatpush1.msra.mxu0 0.0
    %99 = vmatprep.subr.mxu0 0.0
    %100 = vmatpush1.msra.mxu0 0.0
    %101 = vmatprep.subr.mxu0 0.0
    %102 = vmatpush1.msra.mxu0 0.0
    %103 = vmatprep.subr.mxu0 0.0
    %104 = vmatpush1.msra.mxu0 0.0
    %105 = vmatprep.subr.mxu0 0.0
    %106 = vmatpush1.msra.mxu0 0.0
    %107 = vmatprep.subr.mxu0 0.0
    %108 = vmatpush1.msra.mxu0 0.0
    %109 = vmatprep.subr.mxu0 0.0
    %110 = vmatpush1.msra.mxu0 0.0
    %111 = vmatprep.subr.mxu0 0.0
    %112 = vmatpush1.msra.mxu0 0.0
    %113 = vmatprep.subr.mxu0 0.0
    %114 = vmatpush1.msra.mxu0 0.0
    %115 = vmatprep.subr.mxu0 0.0
    %116 = vmatpush1.msra.mxu0 0.0
    %117 = vmatprep.subr.mxu0 0.0
    %118 = vmatpush1.msra.mxu0 0.0
    %119 = vmatprep.mubr.f32.mxu0 0.0
    %120 = vmatmul.mubr.f32.gmra.mrb[0].mxu0 %v38
    %v121 = vpop.f32.mrb[0].mxu0
    %v122 = vadd.f32 0.0, %v121
    %v123 = vpop.f32.mrb[0].mxu0
    %124 = vdwg.mxu0
    %v125 = vadd.f32 %v37, %v122
    %126 = vst [vmem:[#allocation2] sm:$0xff] %v125
    // Predicated region
    $region26: #{tpu_custom_call.1} parent=1 // pred_check
      %p127 = pneg %p32
    $region27: #{tpu_custom_call.1} parent=1 // pred_check_branch
      %129 = sbr.rel (%p127) target = $region29
    $region28: #{tpu_custom_call.1} parent=1 // pred_region
      %v130 = vld [vmem:[%s2] sm:$0xff]
      %v131 = vld [vmem:[%s3] sm:$0x1]
      %133 = vset.pattern.permute.xlu0 0
      %134 = vperm.xlu0 %133, %v130
      %v135 = vpop.permute.xlu0 %134
      %v138 = vlaneseq
      %v139 = vshrl.u32 %v138, 7
      %v140 = vsub.s32 0, %v139
      %v141 = vrot.slane %v131, %v140
      %v143 = vmul.f32 %v135, %v141
      %v144 = vmax.f32 %v143, 1e-08
      %v145 = vld [vmem:[#allocation2] sm:$0xff]
      %v146 = vmul.f32 %v145, 20.0
      %v147 = vrcp.pop %v144
      %v148 = vmul.f32 %v146, %v147
      %149 = vst [vmem:[#allocation6] sm:$0xff] %v148
    $region29: #{tpu_custom_call.1} parent=1 // pred_fallthru
      _
    // Predicated region
    $region30: #{tpu_custom_call.1} parent=1 // pred_check
      _
    $region31: #{tpu_custom_call.1} parent=1 // pred_check_branch
      %151 = sbr.rel (0) target = $region33
    $region32: #{tpu_custom_call.1} parent=1 // pred_region
      %s153 = ssub.s32 128, 128
      %154 = vsyncadd [#allocation5], %s153
      %s156 = sshll.u32 [#allocation6], 4
      %s157 = int_to_ptr.vmem [resolvable:$true] %s156
      %159 = dma.vmem_to_hbm [thread:$0]  %s157, 128, %s4, [#allocation5]
    $region33: #{tpu_custom_call.1} parent=1 // pred_fallthru
      _
    // Predicated region
    $region34: #{tpu_custom_call.1} parent=1 // pred_check
      _
    $region35: #{tpu_custom_call.1} parent=1 // pred_check_branch
      %161 = sbr.rel (0) target = $region37
    $region36: #{tpu_custom_call.1} parent=1 // pred_region
      %162 = dma.done [#allocation5], 128
    $region37: #{tpu_custom_call.1} parent=1 // pred_fallthru
      _
    %163 = vsyncpa [#allocation4], 1
    %164 = vsyncpa [#allocation5], 1

</llo_original>
